<compile_context>
chip_gen: v5e
topology: v5e:2x2
jax: 0.10.0
libtpu: 0.0.40
codegen_flags: <defaults>
</compile_context>

<pallas_src>
import math

import jax
import jax.numpy as jnp
from jax import lax
from jax.experimental import pallas as pl
from jax.experimental.pallas import tpu as pltpu


def _round_up(x, m):
    return ((x + m - 1) // m) * m


def _largest_divisor_at_most(n, cap):
    for d in range(min(n, cap), 0, -1):
        if n % d == 0:
            return d
    return 1


def _make_conv1d_kernel(K, stride, tile_l, bn, has_halo):
    """Kernel body for one (batch-block, L_out-tile) grid step."""
    taps = [(k // stride, k % stride) for k in range(K)]      # k = q*stride + r

    def kernel(*refs):
        if has_halo:
            x_ref, xh_ref, w_ref, b_ref, o_ref = refs
        else:
            x_ref, w_ref, b_ref, o_ref = refs
        bias = b_ref[...]                                     # (C_out, 1) f32, resident

        for i in range(bn):                                   # static unroll over batch block
            acc = None
            for r in range(stride):                           # only phases that carry taps
                qs = [q for (q, rr) in taps if rr == r]
                if not qs:
                    continue
                # Per-phase row covering lanes [j*tile_l, j*tile_l + tile_l + halo).
                # Halo concat is lane-aligned (both pieces are 128-multiples).
                if has_halo:
                    row = jnp.concatenate([x_ref[i, r], xh_ref[i, r]], axis=-1)
                else:
                    row = x_ref[i, r]                         # (C_in, >= tile_l + max q)
                for q in qs:
                    k = q * stride + r
                    # contiguous (unaligned-offset) lane slice + one small MXU dot per tap
                    part = jnp.dot(w_ref[k], row[:, q:q + tile_l],
                                   preferred_element_type=jnp.float32)
                    acc = part if acc is None else acc + part
            o_ref[i] = (acc + bias).astype(o_ref.dtype)

    return kernel


def conv1d_pallas(x, weight, bias, stride, *, block_l_out=512, block_n=4,
                  compute_dtype=jnp.bfloat16):
    """Equivalent of nn.Conv1d(C_in, C_out, K, stride)(x) for x in [N, C_in, L]."""
    N, C_in, L = x.shape
    C_out, C_in_w, K = weight.shape
    assert C_in_w == C_in and K >= 1 and stride >= 1 and L >= K
    L_out = (L - K) // stride + 1
    Q = (K - 1) // stride            # halo in polyphase lanes needed by taps with q > 0
    out_dtype = x.dtype

    # ---------------- tiling of the L_out (lane) axis ----------------------
    multi = L_out > max(block_l_out, 128)
    if not multi:
        # One full-extent lane tile: blocks are full in their last two dims,
        # so the (8,128) rule is trivially satisfied and no halo is needed.
        tile_l, nb_l, has_halo, halo_lanes = L_out, 1, False, 0
        lp = L_out + Q
        l_out_pad = L_out
        x_lanes = lp
    else:
        halo_lanes = _round_up(Q, 128) if Q > 0 else 0
        tile_l = _round_up(block_l_out, 128)
        if halo_lanes:
            tile_l = _round_up(tile_l, halo_lanes)            # halo block index stays integral
        nb_l = pl.cdiv(L_out, tile_l)
        has_halo = halo_lanes > 0
        l_out_pad = nb_l * tile_l
        # one extra tile of lanes so the halo block (lane offset (j+1)*tile_l) is in range
        lp = l_out_pad + (tile_l if has_halo else 0)
        x_lanes = tile_l

    bn = _largest_divisor_at_most(N, block_n)                 # batch elements per grid step

    # ---- single O(|x|) wrapper pass: polyphase re-layout fused with bf16 cast
    # x_poly[n, r, c, j] = x[n, c, j*stride + r]
    target_len = lp * stride
    if target_len > L:
        x = jnp.pad(x, ((0, 0), (0, 0), (0, target_len - L)))
    elif target_len < L:
        x = x[:, :, :target_len]
    x_poly = jnp.transpose(x.reshape(N, C_in, lp, stride),
                           (0, 3, 1, 2)).astype(compute_dtype)       # (N, stride, C_in, lp)
    w_t = jnp.transpose(weight, (2, 0, 1)).astype(compute_dtype)     # (K, C_out, C_in)
    b_col = bias.reshape(C_out, 1).astype(jnp.float32)               # (C_out, 1)

    in_specs = [pl.BlockSpec((bn, stride, C_in, x_lanes),
                             lambda nb, j: (nb, 0, 0, j))]
    call_args = [x_poly]
    if has_halo:
        halo_step = tile_l // halo_lanes
        in_specs.append(pl.BlockSpec((bn, stride, C_in, halo_lanes),
                                     lambda nb, j: (nb, 0, 0, (j + 1) * halo_step)))
        call_args.append(x_poly)                              # same array, halo window
    in_specs += [pl.BlockSpec((K, C_out, C_in), lambda nb, j: (0, 0, 0)),   # weights resident
                 pl.BlockSpec((C_out, 1), lambda nb, j: (0, 0))]            # bias resident
    call_args += [w_t, b_col]

    out_spec = pl.BlockSpec((bn, C_out, tile_l), lambda nb, j: (nb, 0, j))  # lane-dense stores

    # ---- VMEM budget: double-buffered streams + resident weights, capped so it
    # is legal on v7x's 64 MiB and above v5e's 16 MiB default scoped limit.
    cd_bytes = jnp.dtype(compute_dtype).itemsize
    od_bytes = jnp.dtype(out_dtype).itemsize
    step_bytes = (bn * stride * C_in * (x_lanes + halo_lanes) * cd_bytes
                  + bn * C_out * tile_l * od_bytes)
    resident = K * C_out * C_in * cd_bytes + C_out * 4
    vmem_limit = int(min(64 * 2 ** 20, max(32 * 2 ** 20, 4 * (2 * step_bytes + resident))))

    cost = pl.CostEstimate(
        flops=2 * N * L_out * C_out * C_in * K,
        transcendentals=0,
        bytes_accessed=(x_poly.size + w_t.size) * cd_bytes
                       + b_col.size * 4 + N * C_out * l_out_pad * od_bytes)

    out = pl.pallas_call(
        _make_conv1d_kernel(K, stride, tile_l, bn, has_halo),
        out_shape=jax.ShapeDtypeStruct((N, C_out, l_out_pad), out_dtype),
        grid=(N // bn, nb_l),
        in_specs=in_specs,
        out_specs=out_spec,
        compiler_params=pltpu.CompilerParams(
            dimension_semantics=("parallel", "parallel"),     # megacore / v7x 2-TC sharding
            vmem_limit_bytes=vmem_limit),
        cost_estimate=cost,
    )(*call_args)

    if l_out_pad != L_out:
        out = out[:, :, :L_out]
    return out


def init_conv1d_params(key, in_channels, out_channels, kernel_size):
    """Deterministic init mirroring PyTorch Conv1d defaults."""
    fan_in = in_channels * kernel_size
    bound = 1.0 / math.sqrt(fan_in)
    kw, kb = jax.random.split(key)
    weight = jax.random.uniform(kw, (out_channels, in_channels, kernel_size),
                                minval=-bound, maxval=bound, dtype=jnp.float32)
    bias = jax.random.uniform(kb, (out_channels,), minval=-bound, maxval=bound,
                              dtype=jnp.float32)
    return weight, bias


def _reference(x, weight, bias, stride, compute_dtype=jnp.bfloat16):
    # Same operand quantization as the kernel, f32 accumulation (XLA conv).
    xq = x.astype(compute_dtype).astype(jnp.float32)
    wq = weight.astype(compute_dtype).astype(jnp.float32)
    y = lax.conv_general_dilated(xq, wq, window_strides=(stride,), padding="VALID",
                                 dimension_numbers=("NCH", "OIH", "NCH"))
    return y + bias[None, :, None]


if __name__ == "__main__":
    conv = jax.jit(conv1d_pallas,
                   static_argnames=("stride", "block_l_out", "block_n", "compute_dtype"))

    def check(key, N, C_in, L, C_out, K, stride, **kw):
        kx, kp = jax.random.split(key)
        x = jax.random.normal(kx, (N, C_in, L), dtype=jnp.float32)
        weight, bias = init_conv1d_params(kp, C_in, C_out, K)
        y = jax.block_until_ready(conv(x, weight, bias, stride=stride, **kw))
        y_ref = _reference(x, weight, bias, stride)
        L_out = (L - K) // stride + 1
        assert y.shape == (N, C_out, L_out), y.shape
        err = float(jnp.max(jnp.abs(y - y_ref)))
        assert err < 2e-3, err

    key = jax.random.PRNGKey(0)
    k1, k2 = jax.random.split(key)
    # SimpleConvNet(input_channels=4, output_channels=8, kernel_size=3, stride=2)
    check(k1, N=2, C_in=4, L=16, C_out=8, K=3, stride=2)              # single-tile path
    # Longer sequence exercising the lane-tiled + halo path (small tile to force it).
    check(k2, N=2, C_in=4, L=259, C_out=8, K=3, stride=2, block_l_out=128)
    print("KERNEL_OK")
</pallas_src>

<mosaic_0001>
module attributes {stable_mosaic.version = 11 : i64} {
  func.func @kernel(%arg0: i32, %arg1: i32, %arg2: memref<2x2x4x8xbf16, #tpu.memory_space<vmem>>, %arg3: memref<3x8x4xbf16, #tpu.memory_space<vmem>>, %arg4: memref<8x1xf32, #tpu.memory_space<vmem>>, %arg5: memref<2x8x7xf32, #tpu.memory_space<vmem>>) attributes {dimension_semantics = [#tpu.dimension_semantics<parallel>, #tpu.dimension_semantics<parallel>], iteration_bounds = array<i64: 1, 1>, scalar_prefetch = 0 : i64, scratch_operands = 0 : i64, tpu.core_type = #tpu.core_type<tc>, window_params = [{transform_indices = @transform_0, window_bounds = array<i64: 2, 2, 4, 8>}, {pipeline_mode = #tpu.pipeline_mode<synchronous>, transform_indices = @transform_1, window_bounds = array<i64: 3, 8, 4>}, {pipeline_mode = #tpu.pipeline_mode<synchronous>, transform_indices = @transform_2, window_bounds = array<i64: 8, 1>}, {transform_indices = @transform_3, window_bounds = array<i64: 2, 8, 7>}]} {
    %c0 = arith.constant 0 : index
    %c0_0 = arith.constant 0 : index
    %0 = vector.load %arg4[%c0, %c0_0] : memref<8x1xf32, #tpu.memory_space<vmem>>, vector<8x1xf32>
    %c0_1 = arith.constant 0 : index
    %c0_2 = arith.constant 0 : index
    %c0_3 = arith.constant 0 : index
    %c0_4 = arith.constant 0 : index
    %1 = vector.load %arg2[%c0_1, %c0_2, %c0_3, %c0_4] : memref<2x2x4x8xbf16, #tpu.memory_space<vmem>>, vector<1x1x4x8xbf16>
    %2 = vector.shape_cast %1 : vector<1x1x4x8xbf16> to vector<4x8xbf16>
    %c0_5 = arith.constant 0 : index
    %c0_6 = arith.constant 0 : index
    %c0_7 = arith.constant 0 : index
    %3 = vector.load %arg3[%c0_5, %c0_6, %c0_7] : memref<3x8x4xbf16, #tpu.memory_space<vmem>>, vector<1x8x4xbf16>
    %4 = vector.shape_cast %3 : vector<1x8x4xbf16> to vector<8x4xbf16>
    %5 = vector.extract_strided_slice %2 {offsets = [0, 0], sizes = [4, 7], strides = [1, 1]} : vector<4x8xbf16> to vector<4x7xbf16>
    %cst = arith.constant dense<0.000000e+00> : vector<8x7xf32>
    %6 = tpu.matmul %4, %5, %cst {dimension_numbers = #tpu.dot_dimension_numbers<[1], [0], [0], [1], [0, 0, 1, 1], [], []>} : vector<8x4xbf16>, vector<4x7xbf16>, vector<8x7xf32> -> vector<8x7xf32>
    %c2 = arith.constant 2 : index
    %c0_8 = arith.constant 0 : index
    %c0_9 = arith.constant 0 : index
    %7 = vector.load %arg3[%c2, %c0_8, %c0_9] : memref<3x8x4xbf16, #tpu.memory_space<vmem>>, vector<1x8x4xbf16>
    %8 = vector.shape_cast %7 : vector<1x8x4xbf16> to vector<8x4xbf16>
    %9 = vector.extract_strided_slice %2 {offsets = [0, 1], sizes = [4, 7], strides = [1, 1]} : vector<4x8xbf16> to vector<4x7xbf16>
    %cst_10 = arith.constant dense<0.000000e+00> : vector<8x7xf32>
    %10 = tpu.matmul %8, %9, %cst_10 {dimension_numbers = #tpu.dot_dimension_numbers<[1], [0], [0], [1], [0, 0, 1, 1], [], []>} : vector<8x4xbf16>, vector<4x7xbf16>, vector<8x7xf32> -> vector<8x7xf32>
    %11 = arith.addf %6, %10 : vector<8x7xf32>
    %c0_11 = arith.constant 0 : index
    %c1 = arith.constant 1 : index
    %c0_12 = arith.constant 0 : index
    %c0_13 = arith.constant 0 : index
    %12 = vector.load %arg2[%c0_11, %c1, %c0_12, %c0_13] : memref<2x2x4x8xbf16, #tpu.memory_space<vmem>>, vector<1x1x4x8xbf16>
    %13 = vector.shape_cast %12 : vector<1x1x4x8xbf16> to vector<4x8xbf16>
    %c1_14 = arith.constant 1 : index
    %c0_15 = arith.constant 0 : index
    %c0_16 = arith.constant 0 : index
    %14 = vector.load %arg3[%c1_14, %c0_15, %c0_16] : memref<3x8x4xbf16, #tpu.memory_space<vmem>>, vector<1x8x4xbf16>
    %15 = vector.shape_cast %14 : vector<1x8x4xbf16> to vector<8x4xbf16>
    %16 = vector.extract_strided_slice %13 {offsets = [0, 0], sizes = [4, 7], strides = [1, 1]} : vector<4x8xbf16> to vector<4x7xbf16>
    %cst_17 = arith.constant dense<0.000000e+00> : vector<8x7xf32>
    %17 = tpu.matmul %15, %16, %cst_17 {dimension_numbers = #tpu.dot_dimension_numbers<[1], [0], [0], [1], [0, 0, 1, 1], [], []>} : vector<8x4xbf16>, vector<4x7xbf16>, vector<8x7xf32> -> vector<8x7xf32>
    %18 = arith.addf %11, %17 : vector<8x7xf32>
    %19 = vector.broadcast %0 : vector<8x1xf32> to vector<8x7xf32>
    %20 = arith.addf %18, %19 : vector<8x7xf32>
    %c0_18 = arith.constant 0 : index
    %c0_19 = arith.constant 0 : index
    %c0_20 = arith.constant 0 : index
    %21 = vector.load %arg5[%c0_18, %c0_19, %c0_20] : memref<2x8x7xf32, #tpu.memory_space<vmem>>, vector<1x8x7xf32>
    %22 = vector.shape_cast %21 : vector<1x8x7xf32> to vector<8x7xf32>
    %23 = vector.shape_cast %20 : vector<8x7xf32> to vector<1x8x7xf32>
    tpu.vector_store %arg5[%c0_18, %c0_19, %c0_20], %23 {strides = array<i32>} : memref<2x8x7xf32, #tpu.memory_space<vmem>>, vector<1x8x7xf32>,
    %c1_21 = arith.constant 1 : index
    %c0_22 = arith.constant 0 : index
    %c0_23 = arith.constant 0 : index
    %c0_24 = arith.constant 0 : index
    %24 = vector.load %arg2[%c1_21, %c0_22, %c0_23, %c0_24] : memref<2x2x4x8xbf16, #tpu.memory_space<vmem>>, vector<1x1x4x8xbf16>
    %25 = vector.shape_cast %24 : vector<1x1x4x8xbf16> to vector<4x8xbf16>
    %c0_25 = arith.constant 0 : index
    %c0_26 = arith.constant 0 : index
    %c0_27 = arith.constant 0 : index
    %26 = vector.load %arg3[%c0_25, %c0_26, %c0_27] : memref<3x8x4xbf16, #tpu.memory_space<vmem>>, vector<1x8x4xbf16>
    %27 = vector.shape_cast %26 : vector<1x8x4xbf16> to vector<8x4xbf16>
    %28 = vector.extract_strided_slice %25 {offsets = [0, 0], sizes = [4, 7], strides = [1, 1]} : vector<4x8xbf16> to vector<4x7xbf16>
    %cst_28 = arith.constant dense<0.000000e+00> : vector<8x7xf32>
    %29 = tpu.matmul %27, %28, %cst_28 {dimension_numbers = #tpu.dot_dimension_numbers<[1], [0], [0], [1], [0, 0, 1, 1], [], []>} : vector<8x4xbf16>, vector<4x7xbf16>, vector<8x7xf32> -> vector<8x7xf32>
    %c2_29 = arith.constant 2 : index
    %c0_30 = arith.constant 0 : index
    %c0_31 = arith.constant 0 : index
    %30 = vector.load %arg3[%c2_29, %c0_30, %c0_31] : memref<3x8x4xbf16, #tpu.memory_space<vmem>>, vector<1x8x4xbf16>
    %31 = vector.shape_cast %30 : vector<1x8x4xbf16> to vector<8x4xbf16>
    %32 = vector.extract_strided_slice %25 {offsets = [0, 1], sizes = [4, 7], strides = [1, 1]} : vector<4x8xbf16> to vector<4x7xbf16>
    %cst_32 = arith.constant dense<0.000000e+00> : vector<8x7xf32>
    %33 = tpu.matmul %31, %32, %cst_32 {dimension_numbers = #tpu.dot_dimension_numbers<[1], [0], [0], [1], [0, 0, 1, 1], [], []>} : vector<8x4xbf16>, vector<4x7xbf16>, vector<8x7xf32> -> vector<8x7xf32>
    %34 = arith.addf %29, %33 : vector<8x7xf32>
    %c1_33 = arith.constant 1 : index
    %c1_34 = arith.constant 1 : index
    %c0_35 = arith.constant 0 : index
    %c0_36 = arith.constant 0 : index
    %35 = vector.load %arg2[%c1_33, %c1_34, %c0_35, %c0_36] : memref<2x2x4x8xbf16, #tpu.memory_space<vmem>>, vector<1x1x4x8xbf16>
    %36 = vector.shape_cast %35 : vector<1x1x4x8xbf16> to vector<4x8xbf16>
    %c1_37 = arith.constant 1 : index
    %c0_38 = arith.constant 0 : index
    %c0_39 = arith.constant 0 : index
    %37 = vector.load %arg3[%c1_37, %c0_38, %c0_39] : memref<3x8x4xbf16, #tpu.memory_space<vmem>>, vector<1x8x4xbf16>
    %38 = vector.shape_cast %37 : vector<1x8x4xbf16> to vector<8x4xbf16>
    %39 = vector.extract_strided_slice %36 {offsets = [0, 0], sizes = [4, 7], strides = [1, 1]} : vector<4x8xbf16> to vector<4x7xbf16>
    %cst_40 = arith.constant dense<0.000000e+00> : vector<8x7xf32>
    %40 = tpu.matmul %38, %39, %cst_40 {dimension_numbers = #tpu.dot_dimension_numbers<[1], [0], [0], [1], [0, 0, 1, 1], [], []>} : vector<8x4xbf16>, vector<4x7xbf16>, vector<8x7xf32> -> vector<8x7xf32>
    %41 = arith.addf %34, %40 : vector<8x7xf32>
    %42 = vector.broadcast %0 : vector<8x1xf32> to vector<8x7xf32>
    %43 = arith.addf %41, %42 : vector<8x7xf32>
    %c1_41 = arith.constant 1 : index
    %c0_42 = arith.constant 0 : index
    %c0_43 = arith.constant 0 : index
    %44 = vector.load %arg5[%c1_41, %c0_42, %c0_43] : memref<2x8x7xf32, #tpu.memory_space<vmem>>, vector<1x8x7xf32>
    %45 = vector.shape_cast %44 : vector<1x8x7xf32> to vector<8x7xf32>
    %46 = vector.shape_cast %43 : vector<8x7xf32> to vector<1x8x7xf32>
    tpu.vector_store %arg5[%c1_41, %c0_42, %c0_43], %46 {strides = array<i32>} : memref<2x8x7xf32, #tpu.memory_space<vmem>>, vector<1x8x7xf32>,
    return
  }
  func.func @transform_0(%arg0: i32, %arg1: i32) -> (i32, i32, i32, i32) {
    %c0_i32 = arith.constant 0 : i32
    %c0_i32_0 = arith.constant 0 : i32
    %c0_i32_1 = arith.constant 0 : i32
    return %arg0, %c0_i32, %c0_i32_0, %arg1 : i32, i32, i32, i32
  }
  func.func @transform_1(%arg0: i32, %arg1: i32) -> (i32, i32, i32) {
    %c0_i32 = arith.constant 0 : i32
    %c0_i32_0 = arith.constant 0 : i32
    %c0_i32_1 = arith.constant 0 : i32
    %c0_i32_2 = arith.constant 0 : i32
    return %c0_i32, %c0_i32_0, %c0_i32_1 : i32, i32, i32
  }
  func.func @transform_2(%arg0: i32, %arg1: i32) -> (i32, i32) {
    %c0_i32 = arith.constant 0 : i32
    %c0_i32_0 = arith.constant 0 : i32
    %c0_i32_1 = arith.constant 0 : i32
    return %c0_i32, %c0_i32_0 : i32, i32
  }
  func.func @transform_3(%arg0: i32, %arg1: i32) -> (i32, i32, i32) {
    %c0_i32 = arith.constant 0 : i32
    %c0_i32_0 = arith.constant 0 : i32
    return %arg0, %c0_i32, %arg1 : i32, i32, i32
  }
}

</mosaic_0001>

<llo_original>
// kernel: conv1d_pallas.1
$region0: #{conv1d_pallas.1}
  #allocation0 [shape = 'u32[]', space=smem, size = 0x4, offset = 0x4, fixed_abs, tag = 'smem constant byte address 0x4 - core index']
  #allocation1 [shape = 'u32[72,128]{1,0:T(1,128)}', space=vmem, size = 0x9000, scoped, tag = 'internal scratch']
  %s0 = inlined_call_operand.vmem [shape: bf16[2,2,4,8], index: 0, kind: input, shape index: {}]
  %s1 = inlined_call_operand.vmem [shape: bf16[3,8,4], index: 1, kind: input, shape index: {}]
  %s2 = inlined_call_operand.vmem [shape: f32[8,1], index: 2, kind: input, shape index: {}]
  %s3 = inlined_call_operand.vmem [shape: f32[2,8,7], index: 3, kind: output, shape index: {}]
  %s4 = sld [smem:[#allocation0]]
  $region22: #{conv1d_pallas.1} parent=0
    _
  %s6 = ssub.s32 1, %s4
  %s7 = scalar_select 0, %s6, %s4
  // Predicated region
  $region2: #{conv1d_pallas.1} parent=0 // pred_check
    _
  $region3: #{conv1d_pallas.1} parent=0 // pred_check_branch
    %9 = sbr.rel (0) target = $region5
  $region4: #{conv1d_pallas.1} parent=0 // pred_region
    _
  $region5: #{conv1d_pallas.1} parent=0 // pred_fallthru
    _
  // Predicated region
  $region6: #{conv1d_pallas.1} parent=0 // pred_check
    _
  $region7: #{conv1d_pallas.1} parent=0 // pred_check_branch
    %11 = sbr.rel (0) target = $region9
  $region8: #{conv1d_pallas.1} parent=0 // pred_region
    _
  $region9: #{conv1d_pallas.1} parent=0 // pred_fallthru
    _
  // Predicated region
  $region10: #{conv1d_pallas.1} parent=0 // pred_check
    _
  $region11: #{conv1d_pallas.1} parent=0 // pred_check_branch
    %13 = sbr.rel (0) target = $region13
  $region12: #{conv1d_pallas.1} parent=0 // pred_region
    _
  $region13: #{conv1d_pallas.1} parent=0 // pred_fallthru
    _
  %v15 = vld [vmem:[%s2] sm:$0xff]
  %v16 = vld [vmem:[%s0] sm:$0x3]
  %v17 = vld [vmem:[%s1] sm:$0xf]
  %s18 = scalar_lea.vmem %s1, 8
  %v19 = vld [vmem:[%s18] sm:$0xf]
  %21 = vst [vmem:[#allocation1] ss:$4 sm:$0xff] %v16
  %v22 = vld.sshfl [vmem:[#allocation1] sm:$0xff pattern:$0x73625140]
  %24 = vrot.lane.b32.xlu0 %v22, 127
  %v25 = vpop.permute.xlu0 %24
  %vm26 = vcmask 31744
  %v28 = vsel %vm26, %v19, 0
  %vm30 = vcmask 1041408
  %v32 = vsel %vm30, %v25, 0
  %34 = vmatpush.bf16.msra.mxu0 0
  %35 = vmatpush.bf16.msra.mxu0 0
  %36 = vmatpush.bf16.msra.mxu0 0
  %37 = vmatpush.bf16.msra.mxu0 0
  %38 = vmatpush.bf16.msra.mxu0 0
  %39 = vmatpush.bf16.msra.mxu0 0
  %40 = vmatpush.bf16.msra.mxu0 0
  %41 = vmatpush.bf16.msra.mxu0 %v32
  %42 = vmatmul.bf16.gmra.mxu0 %v28
  %v43 = vpop.f32.mrf.mxu0
  %v44 = vadd.f32 0.0, %v43
  %v45 = vpop.f32.mrf.mxu0
  %46 = vdwg.mxu0
  %v48 = vsel %vm26, %v17, 0
  %v50 = vsel %vm30, %v16, 0
  %52 = vmatpush.bf16.msra.mxu0 0
  %53 = vmatpush.bf16.msra.mxu0 0
  %54 = vmatpush.bf16.msra.mxu0 0
  %55 = vmatpush.bf16.msra.mxu0 0
  %56 = vmatpush.bf16.msra.mxu0 0
  %57 = vmatpush.bf16.msra.mxu0 0
  %58 = vmatpush.bf16.msra.mxu0 0
  %59 = vmatpush.bf16.msra.mxu0 %v50
  %60 = vmatmul.bf16.gmra.mxu0 %v48
  %v61 = vpop.f32.mrf.mxu0
  %v62 = vadd.f32 %v44, %v61
  %v63 = vpop.f32.mrf.mxu0
  %64 = vdwg.mxu0
  %s65 = scalar_lea.vmem %s0, 2
  %v66 = vld [vmem:[%s65] sm:$0x3]
  %s67 = scalar_lea.vmem %s1, 4
  %v68 = vld [vmem:[%s67] sm:$0xf]
  %v70 = vsel %vm26, %v68, 0
  %v73 = vsel %vm30, %v66, 0
  %75 = vmatpush.bf16.msra.mxu0 0
  %76 = vmatpush.bf16.msra.mxu0 0
  %77 = vmatpush.bf16.msra.mxu0 0
  %78 = vmatpush.bf16.msra.mxu0 0
  %79 = vmatpush.bf16.msra.mxu0 0
  %80 = vmatpush.bf16.msra.mxu0 0
  %81 = vmatpush.bf16.msra.mxu0 0
  %82 = vmatpush.bf16.msra.mxu0 %v73
  %83 = vmatmul.bf16.gmra.mxu0 %v70
  %v84 = vpop.f32.mrf.mxu0
  %v85 = vadd.f32 0.0, %v84
  %v86 = vpop.f32.mrf.mxu0
  %87 = vdwg.mxu0
  %v88 = vadd.f32 %v62, %v85
  %90 = vset.pattern.permute.xlu0 0
  %91 = vperm.xlu0 %90, %v15
  %v92 = vpop.permute.xlu0 %91
  %v94 = vadd.f32 %v88, %v92
  %vm95 = vcmask 56320
  %96 = vst.msk [vmem:[%s3] sm:$0xff] %vm95, %v94
  %s97 = scalar_lea.vmem %s0, 4
  %v98 = vld [vmem:[%s97] sm:$0x3]
  %v99 = vld [vmem:[%s1] sm:$0xf]
  %v100 = vld [vmem:[%s18] sm:$0xf]
  %102 = vst [vmem:[#allocation1] ss:$4 sm:$0xff] %v98
  %v103 = vld.sshfl [vmem:[#allocation1] sm:$0xff pattern:$0x73625140]
  %105 = vrot.lane.b32.xlu0 %v103, 127
  %v106 = vpop.permute.xlu0 %105
  %v108 = vsel %vm26, %v100, 0
  %v111 = vsel %vm30, %v106, 0
  %113 = vmatpush.bf16.msra.mxu0 0
  %114 = vmatpush.bf16.msra.mxu0 0
  %115 = vmatpush.bf16.msra.mxu0 0
  %116 = vmatpush.bf16.msra.mxu0 0
  %117 = vmatpush.bf16.msra.mxu0 0
  %118 = vmatpush.bf16.msra.mxu0 0
  %119 = vmatpush.bf16.msra.mxu0 0
  %120 = vmatpush.bf16.msra.mxu0 %v111
  %121 = vmatmul.bf16.gmra.mxu0 %v108
  %v122 = vpop.f32.mrf.mxu0
  %v123 = vadd.f32 0.0, %v122
  %v124 = vpop.f32.mrf.mxu0
  %125 = vdwg.mxu0
  %v127 = vsel %vm26, %v99, 0
  %v129 = vsel %vm30, %v98, 0
  %131 = vmatpush.bf16.msra.mxu0 0
  %132 = vmatpush.bf16.msra.mxu0 0
  %133 = vmatpush.bf16.msra.mxu0 0
  %134 = vmatpush.bf16.msra.mxu0 0
  %135 = vmatpush.bf16.msra.mxu0 0
  %136 = vmatpush.bf16.msra.mxu0 0
  %137 = vmatpush.bf16.msra.mxu0 0
  %138 = vmatpush.bf16.msra.mxu0 %v129
  %139 = vmatmul.bf16.gmra.mxu0 %v127
  %v140 = vpop.f32.mrf.mxu0
  %v141 = vadd.f32 %v123, %v140
  %v142 = vpop.f32.mrf.mxu0
  %143 = vdwg.mxu0
  %s144 = scalar_lea.vmem %s0, 6
  %v145 = vld [vmem:[%s144] sm:$0x3]
  %v146 = vld [vmem:[%s67] sm:$0xf]
  %v148 = vsel %vm26, %v146, 0
  %v151 = vsel %vm30, %v145, 0
  %153 = vmatpush.bf16.msra.mxu0 0
  %154 = vmatpush.bf16.msra.mxu0 0
  %155 = vmatpush.bf16.msra.mxu0 0
  %156 = vmatpush.bf16.msra.mxu0 0
  %157 = vmatpush.bf16.msra.mxu0 0
  %158 = vmatpush.bf16.msra.mxu0 0
  %159 = vmatpush.bf16.msra.mxu0 0
  %160 = vmatpush.bf16.msra.mxu0 %v151
  %161 = vmatmul.bf16.gmra.mxu0 %v148
  %v162 = vpop.f32.mrf.mxu0
  %v163 = vadd.f32 0.0, %v162
  %v164 = vpop.f32.mrf.mxu0
  %165 = vdwg.mxu0
  %v166 = vadd.f32 %v141, %v163
  %v167 = vadd.f32 %v166, %v92
  %s168 = scalar_lea.vmem %s3, 8
  %169 = vst.msk [vmem:[%s168] sm:$0xff] %vm95, %v167
  // Predicated region
  $region14: #{conv1d_pallas.1} parent=0 // pred_check
    _
  $region15: #{conv1d_pallas.1} parent=0 // pred_check_branch
    %171 = sbr.rel (0) target = $region17
  $region16: #{conv1d_pallas.1} parent=0 // pred_region
    _
  $region17: #{conv1d_pallas.1} parent=0 // pred_fallthru
    _
  // Predicated region
  $region18: #{conv1d_pallas.1} parent=0 // pred_check
    _
  $region19: #{conv1d_pallas.1} parent=0 // pred_check_branch
    %173 = sbr.rel (0) target = $region21
  $region20: #{conv1d_pallas.1} parent=0 // pred_region
    _
  $region21: #{conv1d_pallas.1} parent=0 // pred_fallthru
    _

</llo_original>
